<compile_context>
chip_gen: v5e
topology: v5e:2x2
jax: 0.10.0
libtpu: 0.0.40
codegen_flags: <defaults>
</compile_context>

<pallas_src>
import functools

import jax
import jax.numpy as jnp
from jax import lax
from jax.experimental import pallas as pl
from jax.experimental.pallas import tpu as pltpu


def _material_attention_kernel(feat_ref, w1t_ref, s1_ref, b1_ref,
                               w2t_ref, s2_ref, b2_ref, beta_ref, out_ref,
                               *, inv_hw):
    # feat_ref : (Bt, C, HW)    batch tile, unpadded
    # w1t_ref  : (C, Ci)        channel_latent 1x1 conv weight (transposed)
    # s1/b1    : (1, Ci)        folded BN scale / bias for channel_latent
    # w2t_ref  : (Ci, C)        channel_up 1x1 conv weight (transposed)
    # s2/b2    : (1, C)         folded BN scale / bias for channel_up
    # beta_ref : (1,) scalar in SMEM
    x = feat_ref[...]                                            # (Bt, C, HW)

    # AdaptiveAvgPool2d(1) + AdaptiveMaxPool2d(1), summed.
    # Sum accumulates in f32 without materializing an f32 copy of the tile;
    # max is exact in the input dtype.
    avg = jnp.sum(x, axis=-1, dtype=jnp.float32) * inv_hw        # (Bt, C) f32
    mx = jnp.max(x, axis=-1).astype(jnp.float32)                 # (Bt, C) f32
    cf = avg + mx

    # channel_latent: 1x1 conv (no bias) -> BN (folded) -> ReLU
    lat = jnp.dot(cf, w1t_ref[...], preferred_element_type=jnp.float32)  # (Bt, Ci)
    lat = jnp.maximum(lat * s1_ref[...] + b1_ref[...], 0.0)

    # affinity = lat @ lat^T per sample (pooled map has spatial size 1),
    # softmax over the last dim, then node = softmax(aff) @ lat.
    # These shapes are tiny (Ci x Ci) and sit entirely under HBM slack.
    aff = lat[:, :, None] * lat[:, None, :]                      # (Bt, Ci, Ci)
    m = jnp.max(aff, axis=-1, keepdims=True)
    e = jnp.exp(aff - m)
    p = e * pl.reciprocal(jnp.sum(e, axis=-1, keepdims=True), approx=True)
    node = jnp.sum(p * lat[:, None, :], axis=-1)                 # (Bt, Ci)

    # channel_up: 1x1 conv (no bias) -> BN (folded) -> ReLU
    attn = jnp.dot(node, w2t_ref[...], preferred_element_type=jnp.float32)  # (Bt, C)
    attn = jnp.maximum(attn * s2_ref[...] + b2_ref[...], 0.0)

    # outs = channel_attention * beta + feat   (broadcast over HW).
    # The broadcast-add stays in the input/output dtype (bf16 on v6e/v7x has
    # bf16 VALU; for f32 inputs this is exact).
    scaled = (attn * beta_ref[0]).astype(out_ref.dtype)          # (Bt, C)
    out_ref[...] = scaled[:, :, None] + x


def _is_v7():
    """Best-effort chip-generation probe via device_kind (never raises)."""
    kind = ""
    try:
        kind = (jax.devices()[0].device_kind or "").lower()
    except Exception:
        pass
    return "7" in kind    # e.g. "TPU7x" / "TPU v7x"


def _choose_batch_tile(B, bytes_per_sample, vmem_budget_bytes, num_cores,
                       resident_mult=8, target_tile_bytes=8 << 20):
    """Pick the batch-tile size Bt (a divisor of B).

    - resident_mult ~ 8: double-buffered input + output plus the kernel's own
      full-tile temporaries.
    - target_tile_bytes: aim for MiB-scale per-step DMAs (roofline-friendly).
    - On multi-TensorCore chips, keep the grid length >= num_cores so the
      "parallel" batch axis can shard across cores.
    """
    cap_by_vmem = max(1, vmem_budget_bytes // max(resident_mult * bytes_per_sample, 1))
    cap_by_target = max(1, target_tile_bytes // max(bytes_per_sample, 1))
    cap = int(min(cap_by_vmem, cap_by_target, B))
    if num_cores >= 2 and B >= num_cores:
        cap = min(cap, max(1, B // num_cores))
    bt = 1
    for d in range(1, cap + 1):        # largest divisor of B <= cap
        if B % d == 0:
            bt = d
    return bt


@jax.jit
def material_attention(feat_nchw, w1, s1, b1, w2, s2, b2, beta):
    B, C, H, W = feat_nchw.shape
    HW = H * W
    Ci = w1.shape[0]

    # No padding: the block's last two dims equal the full array dims, so the
    # (8,128) divisibility rule does not apply and no extra HBM traffic is
    # generated.  Only the final partial vreg of each row gets masked stores.
    x = feat_nchw.reshape(B, C, HW)

    itemsize = jnp.dtype(feat_nchw.dtype).itemsize
    bytes_per_sample = C * HW * itemsize

    # Generation-aware budgets.
    is_v7 = _is_v7()
    num_cores = 2 if is_v7 else 1
    vmem_cap = (48 << 20) if is_v7 else (96 << 20)   # leave headroom vs physical
    tile_budget = max(8 << 20, vmem_cap - (8 << 20))

    Bt = _choose_batch_tile(B, bytes_per_sample, tile_budget, num_cores)
    n_steps = B // Bt
    tile_bytes = Bt * bytes_per_sample

    vmem_limit = int(min(vmem_cap, max(32 << 20, 8 * tile_bytes + (8 << 20))))

    # Row-vector friendly parameter layouts (batch tile along sublanes).
    w1t = jnp.transpose(w1)              # (C, Ci)
    w2t = jnp.transpose(w2)              # (Ci, C)
    s1r = s1.reshape(1, Ci)
    b1r = b1.reshape(1, Ci)
    s2r = s2.reshape(1, C)
    b2r = b2.reshape(1, C)

    kernel = functools.partial(_material_attention_kernel, inv_hw=1.0 / HW)

    # Deeper input pipelining only pays off when steps are short and numerous.
    feat_spec_kwargs = {}
    if n_steps > 2 and tile_bytes < (2 << 20):
        feat_spec_kwargs["pipeline_mode"] = pl.Buffered(3)
    feat_in_spec = pl.BlockSpec((Bt, C, HW), lambda b: (b, 0, 0),
                                **feat_spec_kwargs)

    # Advisory cost estimate: the kernel is HBM-bandwidth-bound.
    cost = pl.CostEstimate(
        flops=int(4 * B * C * Ci + 6 * B * Ci * Ci + 6 * B * C * HW),
        transcendentals=int(B * Ci * (Ci + 1)),
        bytes_accessed=int(2 * B * C * HW * itemsize + 2 * C * Ci * 4
                           + 2 * (C + Ci) * 4),
    )

    out = pl.pallas_call(
        kernel,
        out_shape=jax.ShapeDtypeStruct((B, C, HW), feat_nchw.dtype),
        grid=(n_steps,),
        in_specs=[
            feat_in_spec,                                        # feat tile
            pl.BlockSpec((C, Ci), lambda b: (0, 0)),             # w1^T
            pl.BlockSpec((1, Ci), lambda b: (0, 0)),             # s1
            pl.BlockSpec((1, Ci), lambda b: (0, 0)),             # b1
            pl.BlockSpec((Ci, C), lambda b: (0, 0)),             # w2^T
            pl.BlockSpec((1, C), lambda b: (0, 0)),              # s2
            pl.BlockSpec((1, C), lambda b: (0, 0)),              # b2
            pl.BlockSpec(memory_space=pltpu.MemorySpace.SMEM),   # beta scalar
        ],
        out_specs=pl.BlockSpec((Bt, C, HW), lambda b: (b, 0, 0)),
        input_output_aliases={0: 0},     # out block index == feat block index
        cost_estimate=cost,
        compiler_params=pltpu.CompilerParams(
            dimension_semantics=("parallel",),
            vmem_limit_bytes=vmem_limit),
    )(x, w1t, s1r, b1r, w2t, s2r, b2r, beta)

    return out.reshape(B, C, H, W)


def _reference(feat, w1, s1, b1, w2, s2, b2, beta):
    # Pure-JAX reference mirroring the PyTorch forward (inference-mode BN).
    B, C, H, W = feat.shape
    x = feat.reshape(B, C, H * W)
    cf = jnp.mean(x, axis=-1) + jnp.max(x, axis=-1)                   # (B, C)
    lat = jnp.maximum(cf @ w1.T * s1[:, 0] + b1[:, 0], 0.0)           # (B, Ci)
    aff = lat[:, :, None] * lat[:, None, :]                           # (B, Ci, Ci)
    aff = jax.nn.softmax(aff, axis=-1)
    node = jnp.einsum('bij,bj->bi', aff, lat)                         # (B, Ci)
    attn = jnp.maximum(node @ w2.T * s2[:, 0] + b2[:, 0], 0.0)        # (B, C)
    return attn[:, :, None, None] * beta[0] + feat


if __name__ == "__main__":
    key = jax.random.PRNGKey(0)
    B, C, H, W = 2, 32, 16, 16
    ratio = 8
    Ci = C // ratio
    eps = 1e-5

    keys = jax.random.split(key, 10)
    feat = jax.random.normal(keys[0], (B, C, H, W), dtype=jnp.float32)

    # channel_latent: Conv2d(C -> Ci, 1x1, no bias) + BatchNorm2d(Ci)
    w1 = jax.random.normal(keys[1], (Ci, C), dtype=jnp.float32) * 0.1
    gamma1 = 1.0 + 0.1 * jax.random.normal(keys[2], (Ci,), dtype=jnp.float32)
    bbn1 = 0.05 * jax.random.normal(keys[3], (Ci,), dtype=jnp.float32)
    mean1 = 0.1 * jax.random.normal(keys[4], (Ci,), dtype=jnp.float32)
    var1 = jnp.abs(jax.random.normal(keys[5], (Ci,), dtype=jnp.float32)) + 0.5
    s1 = (gamma1 / jnp.sqrt(var1 + eps)).reshape(Ci, 1)
    b1 = (bbn1 - mean1 * gamma1 / jnp.sqrt(var1 + eps)).reshape(Ci, 1)

    # channel_up: Conv2d(Ci -> C, 1x1, no bias) + BatchNorm2d(C)
    w2 = jax.random.normal(keys[6], (C, Ci), dtype=jnp.float32) * 0.1
    gamma2 = 1.0 + 0.1 * jax.random.normal(keys[7], (C,), dtype=jnp.float32)
    bbn2 = 0.05 * jax.random.normal(keys[8], (C,), dtype=jnp.float32)
    mean2 = 0.1 * jax.random.normal(keys[9], (C,), dtype=jnp.float32)
    var2 = jnp.abs(jax.random.normal(keys[0], (C,), dtype=jnp.float32)) + 0.5
    s2 = (gamma2 / jnp.sqrt(var2 + eps)).reshape(C, 1)
    b2 = (bbn2 - mean2 * gamma2 / jnp.sqrt(var2 + eps)).reshape(C, 1)

    # Module __init__ sets beta = 0 (output would equal the input);
    # use a nonzero deterministic value so the kernel path is exercised.
    beta = jnp.array([0.5], dtype=jnp.float32)

    out = material_attention(feat, w1, s1, b1, w2, s2, b2, beta)
    out = jax.block_until_ready(out)

    ref = _reference(feat, w1, s1, b1, w2, s2, b2, beta)
    assert out.shape == (B, C, H, W)
    # Tolerance loosened slightly because the kernel intentionally uses the
    # EUP approximate reciprocal for the softmax denominator.
    assert jnp.allclose(out, ref, rtol=2e-3, atol=2e-3), \
        f"max abs diff = {jnp.max(jnp.abs(out - ref))}"

    print("KERNEL_OK")
</pallas_src>

<mosaic_0001>
module attributes {stable_mosaic.version = 11 : i64} {
  func.func @_material_attention_kernel(%arg0: i32, %arg1: memref<2x32x256xf32, #tpu.memory_space<vmem>>, %arg2: memref<32x4xf32, #tpu.memory_space<vmem>>, %arg3: memref<1x4xf32, #tpu.memory_space<vmem>>, %arg4: memref<1x4xf32, #tpu.memory_space<vmem>>, %arg5: memref<4x32xf32, #tpu.memory_space<vmem>>, %arg6: memref<1x32xf32, #tpu.memory_space<vmem>>, %arg7: memref<1x32xf32, #tpu.memory_space<vmem>>, %arg8: memref<1xf32, #tpu.memory_space<smem>>, %arg9: memref<2x32x256xf32, #tpu.memory_space<vmem>>) attributes {dimension_semantics = [#tpu.dimension_semantics<parallel>], iteration_bounds = array<i64: 1>, scalar_prefetch = 0 : i64, scratch_operands = 0 : i64, tpu.core_type = #tpu.core_type<tc>, window_params = [{transform_indices = @transform_0, window_bounds = array<i64: 2, 32, 256>}, {pipeline_mode = #tpu.pipeline_mode<synchronous>, transform_indices = @transform_1, window_bounds = array<i64: 32, 4>}, {pipeline_mode = #tpu.pipeline_mode<synchronous>, transform_indices = @transform_2, window_bounds = array<i64: 1, 4>}, {pipeline_mode = #tpu.pipeline_mode<synchronous>, transform_indices = @transform_3, window_bounds = array<i64: 1, 4>}, {pipeline_mode = #tpu.pipeline_mode<synchronous>, transform_indices = @transform_4, window_bounds = array<i64: 4, 32>}, {pipeline_mode = #tpu.pipeline_mode<synchronous>, transform_indices = @transform_5, window_bounds = array<i64: 1, 32>}, {pipeline_mode = #tpu.pipeline_mode<synchronous>, transform_indices = @transform_6, window_bounds = array<i64: 1, 32>}, {transform_indices = @transform_7, window_bounds = array<i64: 1>}, {transform_indices = @transform_8, window_bounds = array<i64: 2, 32, 256>}]} {
    %c0 = arith.constant 0 : index
    %c0_0 = arith.constant 0 : index
    %c0_1 = arith.constant 0 : index
    %0 = vector.load %arg1[%c0, %c0_0, %c0_1] : memref<2x32x256xf32, #tpu.memory_space<vmem>>, vector<2x32x256xf32>
    %cst = arith.constant dense<0.000000e+00> : vector<2x32xf32>
    %1 = vector.multi_reduction <add>, %0, %cst [2] : vector<2x32x256xf32> to vector<2x32xf32>
    %cst_2 = arith.constant 3.906250e-03 : f32
    %2 = vector.broadcast %cst_2 : f32 to vector<2x32xf32>
    %3 = arith.mulf %1, %2 : vector<2x32xf32>
    %cst_3 = arith.constant dense<0xFF800000> : vector<2x32xf32>
    %4 = vector.multi_reduction <maximumf>, %0, %cst_3 [2] : vector<2x32x256xf32> to vector<2x32xf32>
    %5 = arith.addf %3, %4 : vector<2x32xf32>
    %c0_4 = arith.constant 0 : index
    %c0_5 = arith.constant 0 : index
    %6 = vector.load %arg2[%c0_4, %c0_5] : memref<32x4xf32, #tpu.memory_space<vmem>>, vector<32x4xf32>
    %cst_6 = arith.constant dense<0.000000e+00> : vector<2x4xf32>
    %7 = tpu.matmul %5, %6, %cst_6 {dimension_numbers = #tpu.dot_dimension_numbers<[1], [0], [0], [1], [0, 0, 1, 1], [], []>} : vector<2x32xf32>, vector<32x4xf32>, vector<2x4xf32> -> vector<2x4xf32>
    %c0_7 = arith.constant 0 : index
    %c0_8 = arith.constant 0 : index
    %8 = vector.load %arg3[%c0_7, %c0_8] : memref<1x4xf32, #tpu.memory_space<vmem>>, vector<1x4xf32>
    %9 = vector.broadcast %8 : vector<1x4xf32> to vector<2x4xf32>
    %10 = arith.mulf %7, %9 : vector<2x4xf32>
    %c0_9 = arith.constant 0 : index
    %c0_10 = arith.constant 0 : index
    %11 = vector.load %arg4[%c0_9, %c0_10] : memref<1x4xf32, #tpu.memory_space<vmem>>, vector<1x4xf32>
    %12 = vector.broadcast %11 : vector<1x4xf32> to vector<2x4xf32>
    %13 = arith.addf %10, %12 : vector<2x4xf32>
    %cst_11 = arith.constant 0.000000e+00 : f32
    %14 = vector.broadcast %cst_11 : f32 to vector<2x4xf32>
    %15 = arith.maximumf %13, %14 : vector<2x4xf32>
    %16 = vector.shape_cast %15 : vector<2x4xf32> to vector<2x4x1xf32>
    %17 = vector.shape_cast %15 : vector<2x4xf32> to vector<2x1x4xf32>
    %18 = vector.broadcast %16 : vector<2x4x1xf32> to vector<2x4x4xf32>
    %19 = vector.broadcast %17 : vector<2x1x4xf32> to vector<2x4x4xf32>
    %20 = arith.mulf %18, %19 : vector<2x4x4xf32>
    %cst_12 = arith.constant dense<0xFF800000> : vector<2x4xf32>
    %21 = vector.multi_reduction <maximumf>, %20, %cst_12 [2] : vector<2x4x4xf32> to vector<2x4xf32>
    %22 = vector.shape_cast %21 : vector<2x4xf32> to vector<2x4x1xf32>
    %23 = vector.broadcast %22 : vector<2x4x1xf32> to vector<2x4x4xf32>
    %24 = arith.subf %20, %23 : vector<2x4x4xf32>
    %25 = math.exp %24 : vector<2x4x4xf32>
    %cst_13 = arith.constant dense<0.000000e+00> : vector<2x4xf32>
    %26 = vector.multi_reduction <add>, %25, %cst_13 [2] : vector<2x4x4xf32> to vector<2x4xf32>
    %27 = vector.shape_cast %26 : vector<2x4xf32> to vector<2x4x1xf32>
    %28 = tpu.reciprocal %27 {approx = true} : vector<2x4x1xf32> -> vector<2x4x1xf32>
    %29 = vector.broadcast %28 : vector<2x4x1xf32> to vector<2x4x4xf32>
    %30 = arith.mulf %25, %29 : vector<2x4x4xf32>
    %31 = vector.shape_cast %15 : vector<2x4xf32> to vector<2x1x4xf32>
    %32 = vector.broadcast %31 : vector<2x1x4xf32> to vector<2x4x4xf32>
    %33 = arith.mulf %30, %32 : vector<2x4x4xf32>
    %cst_14 = arith.constant dense<0.000000e+00> : vector<2x4xf32>
    %34 = vector.multi_reduction <add>, %33, %cst_14 [2] : vector<2x4x4xf32> to vector<2x4xf32>
    %c0_15 = arith.constant 0 : index
    %c0_16 = arith.constant 0 : index
    %35 = vector.load %arg5[%c0_15, %c0_16] : memref<4x32xf32, #tpu.memory_space<vmem>>, vector<4x32xf32>
    %cst_17 = arith.constant dense<0.000000e+00> : vector<2x32xf32>
    %36 = tpu.matmul %34, %35, %cst_17 {dimension_numbers = #tpu.dot_dimension_numbers<[1], [0], [0], [1], [0, 0, 1, 1], [], []>} : vector<2x4xf32>, vector<4x32xf32>, vector<2x32xf32> -> vector<2x32xf32>
    %c0_18 = arith.constant 0 : index
    %c0_19 = arith.constant 0 : index
    %37 = vector.load %arg6[%c0_18, %c0_19] : memref<1x32xf32, #tpu.memory_space<vmem>>, vector<1x32xf32>
    %38 = vector.broadcast %37 : vector<1x32xf32> to vector<2x32xf32>
    %39 = arith.mulf %36, %38 : vector<2x32xf32>
    %c0_20 = arith.constant 0 : index
    %c0_21 = arith.constant 0 : index
    %40 = vector.load %arg7[%c0_20, %c0_21] : memref<1x32xf32, #tpu.memory_space<vmem>>, vector<1x32xf32>
    %41 = vector.broadcast %40 : vector<1x32xf32> to vector<2x32xf32>
    %42 = arith.addf %39, %41 : vector<2x32xf32>
    %cst_22 = arith.constant 0.000000e+00 : f32
    %43 = vector.broadcast %cst_22 : f32 to vector<2x32xf32>
    %44 = arith.maximumf %42, %43 : vector<2x32xf32>
    %c0_23 = arith.constant 0 : index
    %45 = memref.load %arg8[%c0_23] : memref<1xf32, #tpu.memory_space<smem>>
    %46 = vector.broadcast %45 : f32 to vector<2x32xf32>
    %47 = arith.mulf %44, %46 : vector<2x32xf32>
    %48 = vector.shape_cast %47 : vector<2x32xf32> to vector<2x32x1xf32>
    %49 = vector.broadcast %48 : vector<2x32x1xf32> to vector<2x32x256xf32>
    %50 = arith.addf %49, %0 : vector<2x32x256xf32>
    %c0_24 = arith.constant 0 : index
    %c0_25 = arith.constant 0 : index
    %c0_26 = arith.constant 0 : index
    %51 = vector.load %arg9[%c0_24, %c0_25, %c0_26] : memref<2x32x256xf32, #tpu.memory_space<vmem>>, vector<2x32x256xf32>
    tpu.vector_store %arg9[%c0_24, %c0_25, %c0_26], %50 {strides = array<i32>} : memref<2x32x256xf32, #tpu.memory_space<vmem>>, vector<2x32x256xf32>,
    return
  }
  func.func @transform_0(%arg0: i32) -> (i32, i32, i32) {
    %c0_i32 = arith.constant 0 : i32
    %c0_i32_0 = arith.constant 0 : i32
    %c0_i32_1 = arith.constant 0 : i32
    return %arg0, %c0_i32, %c0_i32_0 : i32, i32, i32
  }
  func.func @transform_1(%arg0: i32) -> (i32, i32) {
    %c0_i32 = arith.constant 0 : i32
    %c0_i32_0 = arith.constant 0 : i32
    %c0_i32_1 = arith.constant 0 : i32
    return %c0_i32, %c0_i32_0 : i32, i32
  }
  func.func @transform_2(%arg0: i32) -> (i32, i32) {
    %c0_i32 = arith.constant 0 : i32
    %c0_i32_0 = arith.constant 0 : i32
    %c0_i32_1 = arith.constant 0 : i32
    return %c0_i32, %c0_i32_0 : i32, i32
  }
  func.func @transform_3(%arg0: i32) -> (i32, i32) {
    %c0_i32 = arith.constant 0 : i32
    %c0_i32_0 = arith.constant 0 : i32
    %c0_i32_1 = arith.constant 0 : i32
    return %c0_i32, %c0_i32_0 : i32, i32
  }
  func.func @transform_4(%arg0: i32) -> (i32, i32) {
    %c0_i32 = arith.constant 0 : i32
    %c0_i32_0 = arith.constant 0 : i32
    %c0_i32_1 = arith.constant 0 : i32
    return %c0_i32, %c0_i32_0 : i32, i32
  }
  func.func @transform_5(%arg0: i32) -> (i32, i32) {
    %c0_i32 = arith.constant 0 : i32
    %c0_i32_0 = arith.constant 0 : i32
    %c0_i32_1 = arith.constant 0 : i32
    return %c0_i32, %c0_i32_0 : i32, i32
  }
  func.func @transform_6(%arg0: i32) -> (i32, i32) {
    %c0_i32 = arith.constant 0 : i32
    %c0_i32_0 = arith.constant 0 : i32
    %c0_i32_1 = arith.constant 0 : i32
    return %c0_i32, %c0_i32_0 : i32, i32
  }
  func.func @transform_7(%arg0: i32) -> i32 {
    %c0_i32 = arith.constant 0 : i32
    %c0_i32_0 = arith.constant 0 : i32
    return %c0_i32 : i32
  }
  func.func @transform_8(%arg0: i32) -> (i32, i32, i32) {
    %c0_i32 = arith.constant 0 : i32
    %c0_i32_0 = arith.constant 0 : i32
    %c0_i32_1 = arith.constant 0 : i32
    return %arg0, %c0_i32, %c0_i32_0 : i32, i32, i32
  }
}

</mosaic_0001>

<llo_original>
// kernel: material_attention.1
$region0: #{material_attention.1}
  #allocation0 [shape = 'u32[]', space=smem, size = 0x4, offset = 0x4, fixed_abs, tag = 'smem constant byte address 0x4 - core index']
  #allocation1 [shape = 'u32[72,128]{1,0:T(1,128)}', space=vmem, size = 0x9000, scoped, tag = 'internal scratch']
  #allocation2 [shape = 'f32[1]{0:T(128)S(6)}', space=smem, size = 0x200, scoped, tag = 'scoped memory for material_attention.1']
  %s0 = inlined_call_operand.vmem [shape: f32[2,32,256], index: 0, kind: input, shape index: {}, may-alias: {0,8}]
  %s1 = inlined_call_operand.vmem [shape: f32[32,4], index: 1, kind: input, shape index: {}]
  %s2 = inlined_call_operand.vmem [shape: f32[1,4], index: 2, kind: input, shape index: {}]
  %s3 = inlined_call_operand.vmem [shape: f32[1,4], index: 3, kind: input, shape index: {}]
  %s4 = inlined_call_operand.vmem [shape: f32[4,32], index: 4, kind: input, shape index: {}]
  %s5 = inlined_call_operand.vmem [shape: f32[1,32], index: 5, kind: input, shape index: {}]
  %s6 = inlined_call_operand.vmem [shape: f32[1,32], index: 6, kind: input, shape index: {}]
  %s7 = inlined_call_operand.<no memory space> [shape: f32[1], index: 7, kind: input, shape index: {}]
  %s8 = inlined_call_operand.vmem [shape: f32[2,32,256], index: 8, kind: output, shape index: {}, may-alias: {0,8}]
  %s9 = sld [smem:[#allocation0]]
  $region42: #{material_attention.1} parent=0
    _
  %s11 = ssub.s32 1, %s9
  %s12 = scalar_select 0, %s11, %s9
  %13 = sst [smem:[#allocation2]] %s7
  // Predicated region
  $region2: #{material_attention.1} parent=0 // pred_check
    _
  $region3: #{material_attention.1} parent=0 // pred_check_branch
    %15 = sbr.rel (0) target = $region5
  $region4: #{material_attention.1} parent=0 // pred_region
    _
  $region5: #{material_attention.1} parent=0 // pred_fallthru
    _
  // Predicated region
  $region6: #{material_attention.1} parent=0 // pred_check
    _
  $region7: #{material_attention.1} parent=0 // pred_check_branch
    %17 = sbr.rel (0) target = $region9
  $region8: #{material_attention.1} parent=0 // pred_region
    _
  $region9: #{material_attention.1} parent=0 // pred_fallthru
    _
  // Predicated region
  $region10: #{material_attention.1} parent=0 // pred_check
    _
  $region11: #{material_attention.1} parent=0 // pred_check_branch
    %19 = sbr.rel (0) target = $region13
  $region12: #{material_attention.1} parent=0 // pred_region
    _
  $region13: #{material_attention.1} parent=0 // pred_fallthru
    _
  // Predicated region
  $region14: #{material_attention.1} parent=0 // pred_check
    _
  $region15: #{material_attention.1} parent=0 // pred_check_branch
    %21 = sbr.rel (0) target = $region17
  $region16: #{material_attention.1} parent=0 // pred_region
    _
  $region17: #{material_attention.1} parent=0 // pred_fallthru
    _
  // Predicated region
  $region18: #{material_attention.1} parent=0 // pred_check
    _
  $region19: #{material_attention.1} parent=0 // pred_check_branch
    %23 = sbr.rel (0) target = $region21
  $region20: #{material_attention.1} parent=0 // pred_region
    _
  $region21: #{material_attention.1} parent=0 // pred_fallthru
    _
  // Predicated region
  $region22: #{material_attention.1} parent=0 // pred_check
    _
  $region23: #{material_attention.1} parent=0 // pred_check_branch
    %25 = sbr.rel (0) target = $region25
  $region24: #{material_attention.1} parent=0 // pred_region
    _
  $region25: #{material_attention.1} parent=0 // pred_fallthru
    _
  // Predicated region
  $region26: #{material_attention.1} parent=0 // pred_check
    _
  $region27: #{material_attention.1} parent=0 // pred_check_branch
    %27 = sbr.rel (0) target = $region29
  $region28: #{material_attention.1} parent=0 // pred_region
    _
  $region29: #{material_attention.1} parent=0 // pred_fallthru
    _
  // Predicated region
  $region30: #{material_attention.1} parent=0 // pred_check
    _
  $region31: #{material_attention.1} parent=0 // pred_check_branch
    %29 = sbr.rel (0) target = $region33
  $region32: #{material_attention.1} parent=0 // pred_region
    _
  $region33: #{material_attention.1} parent=0 // pred_fallthru
    _
  %v30 = vld [vmem:[%s0] sm:$0xff]
  %v31 = vld [vmem:[%s0 + $0x8] sm:$0xff]
  %v32 = vld [vmem:[%s0 + $0x10] sm:$0xff]
  %v33 = vld [vmem:[%s0 + $0x18] sm:$0xff]
  %v34 = vld [vmem:[%s0 + $0x20] sm:$0xff]
  %v35 = vld [vmem:[%s0 + $0x28] sm:$0xff]
  %v36 = vld [vmem:[%s0 + $0x30] sm:$0xff]
  %v37 = vld [vmem:[%s0 + $0x38] sm:$0xff]
  %v38 = vld [vmem:[%s0 + $0x40] sm:$0xff]
  %v39 = vld [vmem:[%s0 + $0x48] sm:$0xff]
  %v40 = vld [vmem:[%s0 + $0x50] sm:$0xff]
  %v41 = vld [vmem:[%s0 + $0x58] sm:$0xff]
  %v42 = vld [vmem:[%s0 + $0x60] sm:$0xff]
  %v43 = vld [vmem:[%s0 + $0x68] sm:$0xff]
  %v44 = vld [vmem:[%s0 + $0x70] sm:$0xff]
  %v45 = vld [vmem:[%s0 + $0x78] sm:$0xff]
  %v46 = vadd.f32 %v30, %v31
  %47 = vadd.xlane.f32.xlu0 %v46
  %v48 = vpop.xlane.xlu0 %47
  %v49 = vadd.f32 %v32, %v33
  %50 = vadd.xlane.f32.xlu0 %v49
  %v51 = vpop.xlane.xlu0 %50
  %v52 = vadd.f32 %v34, %v35
  %53 = vadd.xlane.f32.xlu0 %v52
  %v54 = vpop.xlane.xlu0 %53
  %v55 = vadd.f32 %v36, %v37
  %56 = vadd.xlane.f32.xlu0 %v55
  %v57 = vpop.xlane.xlu0 %56
  %v58 = vadd.f32 %v38, %v39
  %59 = vadd.xlane.f32.xlu0 %v58
  %v60 = vpop.xlane.xlu0 %59
  %v61 = vadd.f32 %v40, %v41
  %62 = vadd.xlane.f32.xlu0 %v61
  %v63 = vpop.xlane.xlu0 %62
  %v64 = vadd.f32 %v42, %v43
  %65 = vadd.xlane.f32.xlu0 %v64
  %v66 = vpop.xlane.xlu0 %65
  %v67 = vadd.f32 %v44, %v45
  %68 = vadd.xlane.f32.xlu0 %v67
  %v69 = vpop.xlane.xlu0 %68
  %v70 = vmul.f32 %v48, 0.00390625
  %v71 = vmul.f32 %v51, 0.00390625
  %v72 = vmul.f32 %v54, 0.00390625
  %v73 = vmul.f32 %v57, 0.00390625
  %v74 = vmul.f32 %v60, 0.00390625
  %v75 = vmul.f32 %v63, 0.00390625
  %v76 = vmul.f32 %v66, 0.00390625
  %v77 = vmul.f32 %v69, 0.00390625
  %v78 = vmax.f32 %v30, %v31
  %79 = vmax.xlane.f32.xlu0 %v78
  %v80 = vpop.xlane.xlu0 %79
  %v81 = vmax.f32 %v32, %v33
  %82 = vmax.xlane.f32.xlu0 %v81
  %v83 = vpop.xlane.xlu0 %82
  %v84 = vmax.f32 %v34, %v35
  %85 = vmax.xlane.f32.xlu0 %v84
  %v86 = vpop.xlane.xlu0 %85
  %v87 = vmax.f32 %v36, %v37
  %88 = vmax.xlane.f32.xlu0 %v87
  %v89 = vpop.xlane.xlu0 %88
  %v90 = vmax.f32 %v38, %v39
  %91 = vmax.xlane.f32.xlu0 %v90
  %v92 = vpop.xlane.xlu0 %91
  %v93 = vmax.f32 %v40, %v41
  %94 = vmax.xlane.f32.xlu0 %v93
  %v95 = vpop.xlane.xlu0 %94
  %v96 = vmax.f32 %v42, %v43
  %97 = vmax.xlane.f32.xlu0 %v96
  %v98 = vpop.xlane.xlu0 %97
  %v99 = vmax.f32 %v44, %v45
  %100 = vmax.xlane.f32.xlu0 %v99
  %v101 = vpop.xlane.xlu0 %100
  %v102 = vadd.f32 %v70, %v80
  %v103 = vadd.f32 %v71, %v83
  %v104 = vadd.f32 %v72, %v86
  %v105 = vadd.f32 %v73, %v89
  %v106 = vadd.f32 %v74, %v92
  %v107 = vadd.f32 %v75, %v95
  %v108 = vadd.f32 %v76, %v98
  %v109 = vadd.f32 %v77, %v101
  %v110 = vld [vmem:[%s1] sm:$0xff]
  %v111 = vld [vmem:[%s1 + $0x8] sm:$0xff]
  %v112 = vld [vmem:[%s1 + $0x10] sm:$0xff]
  %v113 = vld [vmem:[%s1 + $0x18] sm:$0xff]
  %v122 = vlaneseq
  %v123 = vand.u32 %v122, 127
  %v124 = vperm.slane %v102, %v123
  %v125 = vadd.s32 %v123, 4294967288
  %v126 = vperm.slane %v103, %v125
  %vm127 = vcmask 130112
  %v128 = vsel %vm127, %v126, %v124
  %v129 = vadd.s32 %v123, 4294967280
  %v130 = vperm.slane %v104, %v129
  %vm131 = vcmask 195712
  %v132 = vsel %vm131, %v130, %v128
  %v133 = vadd.s32 %v123, 4294967272
  %v134 = vperm.slane %v105, %v133
  %vm135 = vcmask 261312
  %v136 = vsel %vm135, %v134, %v132
  %v137 = vperm.slane %v106, %v123
  %v138 = vperm.slane %v107, %v125
  %v139 = vsel %vm127, %v138, %v137
  %v140 = vperm.slane %v108, %v129
  %v141 = vsel %vm131, %v140, %v139
  %v142 = vperm.slane %v109, %v133
  %v143 = vsel %vm135, %v142, %v141
  %vm144 = vcmask 1041409
  %v145 = vsel %vm144, %v143, %v136
  %vm146 = vcmask 261120
  %v147 = vsel %vm146, %v145, 0
  %149 = vmatpush.msra.mxu0 0.0
  %150 = vmatpush.msra.mxu0 0.0
  %151 = vmatpush.msra.mxu0 0.0
  %152 = vmatpush.msra.mxu0 0.0
  %153 = vmatpush.msra.mxu0 0.0
  %154 = vmatpush.msra.mxu0 0.0
  %155 = vmatpush.msra.mxu0 0.0
  %156 = vmatpush.msra.mxu0 0.0
  %157 = vmatpush.msra.mxu0 0.0
  %158 = vmatpush.msra.mxu0 0.0
  %159 = vmatpush.msra.mxu0 0.0
  %160 = vmatpush.msra.mxu0 0.0
  %161 = vmatpush.msra.mxu0 %v113
  %162 = vmatpush.msra.mxu0 %v112
  %163 = vmatpush.msra.mxu0 %v111
  %164 = vmatpush.msra.mxu0 %v110
  %165 = vmatmul.f32.gmra.mxu0 %v147
  %v166 = vpop.f32.mrf.mxu0
  %v167 = vadd.f32 0.0, %v166
  %168 = vdwg.mxu0
  %v169 = vld [vmem:[%s2] sm:$0x1]
  %v171 = vperm.slane %v169, 0
  %v173 = vmul.f32 %v167, %v171
  %v174 = vld [vmem:[%s3] sm:$0x1]
  %v176 = vperm.slane %v174, 0
  %v178 = vadd.f32 %v173, %v176
  %v179 = vmax.f32 %v178, 0.0
  %v180 = vperm.slane %v179, 0
  %v181 = vlaneseq
  %v182 = vshrl.u32 %v181, 7
  %184 = vset.pattern.permute.xlu0 %v182
  %185 = vperm.xlu0 %184, %v180
  %v186 = vpop.permute.xlu0 %185
  %v187 = vperm.slane %v179, 1
  %v188 = vlaneseq
  %v189 = vshrl.u32 %v188, 7
  %191 = vset.pattern.permute.xlu0 %v189
  %192 = vperm.xlu0 %191, %v187
  %v193 = vpop.permute.xlu0 %192
  %v195 = vrot.slane %v179, 1
  %v196 = vperm.slane %v179, 0
  %v197 = vperm.slane %v195, 0
  %v200 = vmul.f32 %v186, %v196
  %v201 = vmul.f32 %v193, %v197
  %vm202 = vcmask 27648
  %v203 = vsel %vm202, %v200, -inf
  %204 = vmax.xlane.f32.xlu0 %v203
  %v205 = vpop.xlane.xlu0 %204
  %v206 = vsel %vm202, %v201, -inf
  %207 = vmax.xlane.f32.xlu0 %v206
  %v208 = vpop.xlane.xlu0 %207
  %v209 = vsub.f32 %v200, %v205
  %v210 = vsub.f32 %v201, %v208
  %v211 = vmul.f32 %v209, 1.442695
  %v212 = vpow.pop %v211
  %v213 = vmul.f32 %v210, 1.442695
  %v214 = vpow.pop %v213
  %v215 = vsel %vm202, %v212, 0.0
  %216 = vadd.xlane.f32.xlu0 %v215
  %v217 = vpop.xlane.xlu0 %216
  %v218 = vsel %vm202, %v214, 0.0
  %219 = vadd.xlane.f32.xlu0 %v218
  %v220 = vpop.xlane.xlu0 %219
  %v221 = vrcp.pop %v217
  %v222 = vrcp.pop %v220
  %v223 = vmul.f32 %v212, %v221
  %v224 = vmul.f32 %v214, %v222
  %v225 = vmul.f32 %v223, %v196
  %v226 = vmul.f32 %v224, %v197
  %v227 = vsel %vm202, %v225, 0.0
  %228 = vadd.xlane.f32.xlu0 %v227
  %v229 = vpop.xlane.xlu0 %228
  %v230 = vsel %vm202, %v226, 0.0
  %231 = vadd.xlane.f32.xlu0 %v230
  %v232 = vpop.xlane.xlu0 %231
  %v233 = vld [vmem:[%s4] sm:$0xf]
  %v236 = vperm.slane %v229, %v123
  %v237 = vperm.slane %v232, %v123
  %v238 = vsel %vm144, %v237, %v236
  %vm239 = vcmask 31744
  %v240 = vsel %vm239, %v238, 0
  %vm242 = vcmask 1043456
  %v244 = vsel %vm242, %v233, 0
  %246 = vmatpush.msra.mxu0 0.0
  %247 = vmatpush.msra.mxu0 0.0
  %248 = vmatpush.msra.mxu0 0.0
  %249 = vmatpush.msra.mxu0 0.0
  %250 = vmatpush.msra.mxu0 0.0
  %251 = vmatpush.msra.mxu0 0.0
  %252 = vmatpush.msra.mxu0 0.0
  %253 = vmatpush.msra.mxu0 0.0
  %254 = vmatpush.msra.mxu0 0.0
  %255 = vmatpush.msra.mxu0 0.0
  %256 = vmatpush.msra.mxu0 0.0
  %257 = vmatpush.msra.mxu0 0.0
  %258 = vmatpush.msra.mxu0 0.0
  %259 = vmatpush.msra.mxu0 0.0
  %260 = vmatpush.msra.mxu0 0.0
  %261 = vmatpush.msra.mxu0 %v244
  %262 = vmatmul.f32.gmra.mxu0 %v240
  %v263 = vpop.f32.mrf.mxu0
  %v264 = vadd.f32 0.0, %v263
  %265 = vdwg.mxu0
  %v266 = vld [vmem:[%s5] sm:$0x1]
  %v268 = vperm.slane %v266, 0
  %v270 = vmul.f32 %v264, %v268
  %v271 = vld [vmem:[%s6] sm:$0x1]
  %v273 = vperm.slane %v271, 0
  %v275 = vadd.f32 %v270, %v273
  %v276 = vmax.f32 %v275, 0.0
  %s277 = sld [smem:[#allocation2]]
  %v278 = vstv %s277
  %v279 = vmul.f32 %v276, %v278
  %v280 = vperm.slane %v279, 0
  %v281 = vlaneseq
  %v282 = vshrl.u32 %v281, 7
  %284 = vset.pattern.permute.xlu0 %v282
  %285 = vperm.xlu0 %284, %v280
  %v286 = vpop.permute.xlu0 %285
  %v287 = vlaneseq
  %v288 = vshrl.u32 %v287, 7
  %v289 = vadd.s32 %v288, 8
  %290 = vset.pattern.permute.xlu0 %v289
  %291 = vperm.xlu0 %290, %v280
  %v292 = vpop.permute.xlu0 %291
  %v293 = vlaneseq
  %v294 = vshrl.u32 %v293, 7
  %v295 = vadd.s32 %v294, 16
  %296 = vset.pattern.permute.xlu0 %v295
  %297 = vperm.xlu0 %296, %v280
  %v298 = vpop.permute.xlu0 %297
  %v299 = vlaneseq
  %v300 = vshrl.u32 %v299, 7
  %v301 = vadd.s32 %v300, 24
  %302 = vset.pattern.permute.xlu0 %v301
  %303 = vperm.xlu0 %302, %v280
  %v304 = vpop.permute.xlu0 %303
  %v305 = vperm.slane %v279, 1
  %v306 = vlaneseq
  %v307 = vshrl.u32 %v306, 7
  %309 = vset.pattern.permute.xlu0 %v307
  %310 = vperm.xlu0 %309, %v305
  %v311 = vpop.permute.xlu0 %310
  %v312 = vlaneseq
  %v313 = vshrl.u32 %v312, 7
  %v314 = vadd.s32 %v313, 8
  %315 = vset.pattern.permute.xlu0 %v314
  %316 = vperm.xlu0 %315, %v305
  %v317 = vpop.permute.xlu0 %316
  %v318 = vlaneseq
  %v319 = vshrl.u32 %v318, 7
  %v320 = vadd.s32 %v319, 16
  %321 = vset.pattern.permute.xlu0 %v320
  %322 = vperm.xlu0 %321, %v305
  %v323 = vpop.permute.xlu0 %322
  %v324 = vlaneseq
  %v325 = vshrl.u32 %v324, 7
  %v326 = vadd.s32 %v325, 24
  %327 = vset.pattern.permute.xlu0 %v326
  %328 = vperm.xlu0 %327, %v305
  %v329 = vpop.permute.xlu0 %328
  %v330 = vadd.f32 %v286, %v30
  %v331 = vadd.f32 %v286, %v31
  %v332 = vadd.f32 %v292, %v32
  %v333 = vadd.f32 %v292, %v33
  %v334 = vadd.f32 %v298, %v34
  %v335 = vadd.f32 %v298, %v35
  %v336 = vadd.f32 %v304, %v36
  %v337 = vadd.f32 %v304, %v37
  %v338 = vadd.f32 %v311, %v38
  %v339 = vadd.f32 %v311, %v39
  %v340 = vadd.f32 %v317, %v40
  %v341 = vadd.f32 %v317, %v41
  %v342 = vadd.f32 %v323, %v42
  %v343 = vadd.f32 %v323, %v43
  %v344 = vadd.f32 %v329, %v44
  %v345 = vadd.f32 %v329, %v45
  %346 = vst [vmem:[%s8] sm:$0xff] %v330
  %347 = vst [vmem:[%s8 + $0x8] sm:$0xff] %v331
  %348 = vst [vmem:[%s8 + $0x10] sm:$0xff] %v332
  %349 = vst [vmem:[%s8 + $0x18] sm:$0xff] %v333
  %350 = vst [vmem:[%s8 + $0x20] sm:$0xff] %v334
  %351 = vst [vmem:[%s8 + $0x28] sm:$0xff] %v335
  %352 = vst [vmem:[%s8 + $0x30] sm:$0xff] %v336
  %353 = vst [vmem:[%s8 + $0x38] sm:$0xff] %v337
  %354 = vst [vmem:[%s8 + $0x40] sm:$0xff] %v338
  %355 = vst [vmem:[%s8 + $0x48] sm:$0xff] %v339
  %356 = vst [vmem:[%s8 + $0x50] sm:$0xff] %v340
  %357 = vst [vmem:[%s8 + $0x58] sm:$0xff] %v341
  %358 = vst [vmem:[%s8 + $0x60] sm:$0xff] %v342
  %359 = vst [vmem:[%s8 + $0x68] sm:$0xff] %v343
  %360 = vst [vmem:[%s8 + $0x70] sm:$0xff] %v344
  %361 = vst [vmem:[%s8 + $0x78] sm:$0xff] %v345
  // Predicated region
  $region34: #{material_attention.1} parent=0 // pred_check
    _
  $region35: #{material_attention.1} parent=0 // pred_check_branch
    %363 = sbr.rel (0) target = $region37
  $region36: #{material_attention.1} parent=0 // pred_region
    _
  $region37: #{material_attention.1} parent=0 // pred_fallthru
    _
  // Predicated region
  $region38: #{material_attention.1} parent=0 // pred_check
    _
  $region39: #{material_attention.1} parent=0 // pred_check_branch
    %365 = sbr.rel (0) target = $region41
  $region40: #{material_attention.1} parent=0 // pred_region
    _
  $region41: #{material_attention.1} parent=0 // pred_fallthru
    _

</llo_original>
